<compile_context>
chip_gen: v7x
topology: tpu7x:2x2x1
jax: 0.10.0
libtpu: 0.0.40
codegen_flags: <defaults>
</compile_context>

<pallas_src>
import functools

import jax
import jax.numpy as jnp
from jax.experimental import pallas as pl
from jax.experimental.pallas import tpu as pltpu


def find_multiple(n: int, k: int) -> int:
    if n % k == 0:
        return n
    return n + k - (n % k)


def _buffered(n):
    """pl.Buffered(n) if available on this JAX version, else default buffering."""
    return pl.Buffered(n) if hasattr(pl, "Buffered") else None


def _block_spec(shape, index_map, mode=None):
    """BlockSpec with optional pipeline_mode (gracefully ignored if unsupported)."""
    if mode is None:
        return pl.BlockSpec(shape, index_map)
    try:
        return pl.BlockSpec(shape, index_map, pipeline_mode=mode)
    except TypeError:
        return pl.BlockSpec(shape, index_map)


def swiglu_mlp_kernel(x_ref, w12_ref, w3_ref, o_ref, acc_ref, *, th, gate_dtype):
    """One (M-tile, H-tile) step of the fused SwiGLU MLP.

    x_ref  : (tm, D)     bf16 activation tile (streamed along grid axis 0)
    w12_ref: (D, 2*th)   [W_fc1^T tile | W_fc2^T tile], bf16
    w3_ref : (th, D)     W_proj^T tile, bf16
    o_ref  : (tm, D)     output tile (written on the last H step)
    acc_ref: (tm, D) f32 accumulator scratch (persistent across the H axis)
    """
    h_idx = pl.program_id(1)

    @pl.when(h_idx == 0)
    def _init():
        acc_ref[...] = jnp.zeros_like(acc_ref)

    # Fused c_fc1 + c_fc2: one (tm, D) x (D, 2*th) MXU pass, bf16 in / f32 acc.
    x12 = jnp.dot(x_ref[...], w12_ref[...], preferred_element_type=jnp.float32)

    # Static, lane-aligned slices (th is a multiple of 128 or equals full H).
    x1 = x12[:, :th].astype(gate_dtype)
    x2 = x12[:, th:].astype(gate_dtype)

    # SiLU(x1) * x2 — sigmoid goes to the EUP slot; gate dtype is f32 on v5e
    # (no bf16 VPU/EUP there) and bf16 on v6e/v7x.
    g = (x1 * jax.nn.sigmoid(x1)) * x2

    # Partial c_proj contribution of this H tile, accumulated in f32.
    acc_ref[...] += jnp.dot(g.astype(jnp.bfloat16), w3_ref[...],
                            preferred_element_type=jnp.float32)

    @pl.when(h_idx == pl.num_programs(1) - 1)
    def _store():
        o_ref[...] = acc_ref[...].astype(o_ref.dtype)


@functools.partial(jax.jit, static_argnames=("tm", "gate_bf16"))
def quantized_mlp_forward(x, w_fc1, w_fc2, w_proj, *, tm=None, gate_bf16=False):
    """x: (B, S, D) float32.  Weights in PyTorch nn.Linear layout:
    w_fc1, w_fc2: (H, D); w_proj: (D, H).  Returns (B, S, D) in x.dtype."""
    B, S, D = x.shape
    H = w_fc1.shape[0]
    M = B * S
    out_dtype = x.dtype
    gate_dtype = jnp.bfloat16 if gate_bf16 else jnp.float32

    # ---------------- M tiling ------------------------------------------------
    # 128 rows fill the MXU on v5e; 256 amortizes per-step overhead on v6e/v7x
    # when M is large.  tm is clamped to M (no wrapper-side padding); the last
    # ragged block (if any) is masked by Pallas on writeback.
    if tm is None:
        tm = 256 if M >= 1024 else 128
    tm_eff = min(tm, M)
    n_blocks = pl.cdiv(M, tm_eff)

    # ---------------- generation-aware VMEM budget ----------------------------
    try:
        vmem_cap = int(pltpu.get_tpu_info().vmem_capacity_bytes)
    except Exception:  # pragma: no cover - conservative fallback
        vmem_cap = 128 * 1024 * 1024
    vmem_budget = int(vmem_cap * 0.85)          # ~109 MiB v5e/v6e, ~54 MiB v7x
    weight_budget = vmem_budget // 2

    # ---------------- H tiling (structural fix for large models) --------------
    # Resident weights cost 6*D*H bytes (bf16, single-buffered).  If that blows
    # half the budget, tile H (double-buffered tiles cost 12*D*th).
    th = H
    if 6 * D * H > weight_budget:
        while th % 2 == 0 and th // 2 >= 256 and 12 * D * th > weight_budget:
            th //= 2
    n_h_blocks = H // th
    resident = n_h_blocks == 1

    # ---------------- operand prep (once, in the wrapper) ----------------------
    # bf16 x stream: identical numerics to casting in-kernel, half the DMA bytes.
    x2d = x.reshape(M, D).astype(jnp.bfloat16)

    # Interleave W_fc1^T / W_fc2^T per H tile -> each (D, 2*th) block holds
    # [W1 tile h | W2 tile h] contiguously, enabling one fused dot per step.
    w1t = w_fc1.T.reshape(D, n_h_blocks, th)
    w2t = w_fc2.T.reshape(D, n_h_blocks, th)
    w12 = jnp.stack([w1t, w2t], axis=2).reshape(D, 2 * H).astype(jnp.bfloat16)
    w3t = w_proj.T.astype(jnp.bfloat16)                      # (H, D)

    # ---------------- buffering policy -----------------------------------------
    # Grid-invariant weights: single buffer (double-buffering them is pure VMEM
    # waste).  When H is tiled the weights change per step -> default (2).
    w_mode = _buffered(1) if resident else None
    # Mem-bound small-H regime: deepen the x pipeline to hide HBM latency.
    x_mode = _buffered(3) if (resident and n_blocks >= 4 and H <= 512) else None

    x_copies = 3 if x_mode is not None else 2
    w_copies = 1 if resident else 2
    buf_bytes = (w_copies * 6 * D * th            # w12 + w3 tiles (bf16)
                 + x_copies * tm_eff * D * 2      # x tiles (bf16)
                 + 2 * tm_eff * D * 4             # output tiles (f32)
                 + tm_eff * D * 4)                # accumulator scratch (f32)
    vmem_limit = int(min(vmem_budget, max(2 * buf_bytes + (8 << 20), 32 << 20)))

    cost = pl.CostEstimate(
        flops=6 * M * D * H,                      # fused fc (4MDH) + proj (2MDH)
        transcendentals=M * H,                    # sigmoid
        bytes_accessed=M * D * 2 + M * D * 4 + 6 * D * H,
    )

    out2d = pl.pallas_call(
        functools.partial(swiglu_mlp_kernel, th=th, gate_dtype=gate_dtype),
        out_shape=jax.ShapeDtypeStruct((M, D), out_dtype),
        grid_spec=pltpu.PrefetchScalarGridSpec(
            num_scalar_prefetch=0,
            grid=(n_blocks, n_h_blocks),
            in_specs=[
                _block_spec((tm_eff, D), lambda i, h: (i, 0), x_mode),   # x tile
                _block_spec((D, 2 * th), lambda i, h: (0, h), w_mode),   # [W1|W2]^T
                _block_spec((th, D), lambda i, h: (h, 0), w_mode),       # W_proj^T
            ],
            out_specs=pl.BlockSpec((tm_eff, D), lambda i, h: (i, 0)),
            scratch_shapes=[pltpu.VMEM((tm_eff, D), jnp.float32)],
        ),
        compiler_params=pltpu.CompilerParams(
            dimension_semantics=("parallel", "arbitrary"),   # M sharded (v7x 2 TCs)
            vmem_limit_bytes=vmem_limit,
        ),
        cost_estimate=cost,
    )(x2d, w12, w3t)

    return out2d.reshape(B, S, D)


def reference_forward(x, w_fc1, w_fc2, w_proj):
    """Pure-JAX f32 reference matching the PyTorch float-mode forward."""
    x1 = x @ w_fc1.T
    x2 = x @ w_fc2.T
    h = jax.nn.silu(x1) * x2
    return h @ w_proj.T


def _default_gate_bf16() -> bool:
    """bf16 gating only on chips with bf16 VPU/EUP (v6e and newer)."""
    try:
        kind = jax.devices()[0].device_kind.lower()
    except Exception:
        return False
    return not any(t in kind for t in ("v2", "v3", "v4", "v5"))


if __name__ == "__main__":
    # Config implied by the module:
    #   n_embd_per_head=16, n_head=4 -> n_embd = 64
    #   hidden_dim = 4 * 64 = 256 ; n_hidden = find_multiple(int(2*256/3), 256) = 256
    n_embd_per_head, n_head = 16, 4
    n_embd = n_embd_per_head * n_head                        # 64
    hidden_dim = 4 * n_embd
    n_hidden = find_multiple(int(2 * hidden_dim / 3), 256)   # 256

    batch, seq = 2, 8

    key = jax.random.PRNGKey(0)
    kx, k1, k2, k3 = jax.random.split(key, 4)

    x = jax.random.normal(kx, (batch, seq, n_embd), dtype=jnp.float32)
    # nn.Linear(in, out, bias=False).weight has shape (out, in); init ~ U(-1/sqrt(in), 1/sqrt(in))
    w_fc1 = jax.random.uniform(k1, (n_hidden, n_embd), jnp.float32,
                               -1.0 / n_embd ** 0.5, 1.0 / n_embd ** 0.5)
    w_fc2 = jax.random.uniform(k2, (n_hidden, n_embd), jnp.float32,
                               -1.0 / n_embd ** 0.5, 1.0 / n_embd ** 0.5)
    w_proj = jax.random.uniform(k3, (n_embd, n_hidden), jnp.float32,
                                -1.0 / n_hidden ** 0.5, 1.0 / n_hidden ** 0.5)

    out = quantized_mlp_forward(x, w_fc1, w_fc2, w_proj,
                                gate_bf16=_default_gate_bf16())
    out = jax.block_until_ready(out)

    ref = reference_forward(x, w_fc1, w_fc2, w_proj)
    assert out.shape == (batch, seq, n_embd)
    # bf16 matmul inputs (and possibly bf16 gating) with f32 accumulation ->
    # loosened tolerance vs the pure-f32 reference.
    assert jnp.allclose(out, ref, atol=2e-2, rtol=2e-2), "mismatch vs reference"

    # NOTE: QuantStub/DeQuantStub are identity in float (non-converted) mode; no
    # fake-quant is applied, matching the PyTorch module's float forward.
    print("KERNEL_OK")
</pallas_src>

<mosaic_0001>
module attributes {stable_mosaic.version = 11 : i64} {
  func.func @swiglu_mlp_kernel(%arg0: i32, %arg1: i32, %arg2: memref<16x64xbf16, #tpu.memory_space<vmem>>, %arg3: memref<64x512xbf16, #tpu.memory_space<vmem>>, %arg4: memref<256x64xbf16, #tpu.memory_space<vmem>>, %arg5: memref<16x64xf32, #tpu.memory_space<vmem>>, %arg6: memref<16x64xf32, #tpu.memory_space<vmem>>) attributes {dimension_semantics = [#tpu.dimension_semantics<parallel>, #tpu.dimension_semantics<arbitrary>], iteration_bounds = array<i64: 1, 1>, scalar_prefetch = 0 : i64, scratch_operands = 1 : i64, tpu.core_type = #tpu.core_type<tc>, window_params = [{transform_indices = @transform_0, window_bounds = array<i64: 16, 64>}, {pipeline_mode = #tpu.pipeline_mode<synchronous>, transform_indices = @transform_1, window_bounds = array<i64: 64, 512>}, {pipeline_mode = #tpu.pipeline_mode<synchronous>, transform_indices = @transform_2, window_bounds = array<i64: 256, 64>}, {transform_indices = @transform_3, window_bounds = array<i64: 16, 64>}]} {
    %c0_i32 = arith.constant 0 : i32
    %0 = arith.cmpi eq, %arg1, %c0_i32 : i32
    %1 = arith.extui %0 : i1 to i32
    %c0_i32_0 = arith.constant 0 : i32
    %2 = arith.cmpi ne, %1, %c0_i32_0 : i32
    scf.if %2 {
      %cst_14 = arith.constant 0.000000e+00 : f32
      %25 = vector.broadcast %cst_14 : f32 to vector<16x64xf32>
      %c0_15 = arith.constant 0 : index
      %c0_16 = arith.constant 0 : index
      %26 = vector.load %arg6[%c0_15, %c0_16] : memref<16x64xf32, #tpu.memory_space<vmem>>, vector<16x64xf32>
      tpu.vector_store %arg6[%c0_15, %c0_16], %25 {strides = array<i32>} : memref<16x64xf32, #tpu.memory_space<vmem>>, vector<16x64xf32>,
    } else {
    }
    %c0 = arith.constant 0 : index
    %c0_1 = arith.constant 0 : index
    %3 = vector.load %arg2[%c0, %c0_1] : memref<16x64xbf16, #tpu.memory_space<vmem>>, vector<16x64xbf16>
    %c0_2 = arith.constant 0 : index
    %c0_3 = arith.constant 0 : index
    %4 = vector.load %arg3[%c0_2, %c0_3] : memref<64x512xbf16, #tpu.memory_space<vmem>>, vector<64x512xbf16>
    %cst = arith.constant dense<0.000000e+00> : vector<16x512xf32>
    %5 = tpu.matmul %3, %4, %cst {dimension_numbers = #tpu.dot_dimension_numbers<[1], [0], [0], [1], [0, 0, 1, 1], [], []>} : vector<16x64xbf16>, vector<64x512xbf16>, vector<16x512xf32> -> vector<16x512xf32>
    %6 = vector.extract_strided_slice %5 {offsets = [0, 0], sizes = [16, 256], strides = [1, 1]} : vector<16x512xf32> to vector<16x256xf32>
    %7 = arith.truncf %6 : vector<16x256xf32> to vector<16x256xbf16>
    %8 = vector.extract_strided_slice %5 {offsets = [0, 256], sizes = [16, 256], strides = [1, 1]} : vector<16x512xf32> to vector<16x256xf32>
    %9 = arith.truncf %8 : vector<16x256xf32> to vector<16x256xbf16>
    %10 = arith.negf %7 : vector<16x256xbf16>
    %11 = math.exp %10 : vector<16x256xbf16>
    %cst_4 = arith.constant 1.000000e+00 : bf16
    %12 = vector.broadcast %cst_4 : bf16 to vector<16x256xbf16>
    %13 = arith.addf %12, %11 : vector<16x256xbf16>
    %14 = arith.divf %12, %13 : vector<16x256xbf16>
    %15 = arith.mulf %7, %14 : vector<16x256xbf16>
    %16 = arith.mulf %15, %9 : vector<16x256xbf16>
    %c0_5 = arith.constant 0 : index
    %c0_6 = arith.constant 0 : index
    %17 = vector.load %arg6[%c0_5, %c0_6] : memref<16x64xf32, #tpu.memory_space<vmem>>, vector<16x64xf32>
    %c0_7 = arith.constant 0 : index
    %c0_8 = arith.constant 0 : index
    %18 = vector.load %arg4[%c0_7, %c0_8] : memref<256x64xbf16, #tpu.memory_space<vmem>>, vector<256x64xbf16>
    %cst_9 = arith.constant dense<0.000000e+00> : vector<16x64xf32>
    %19 = tpu.matmul %16, %18, %cst_9 {dimension_numbers = #tpu.dot_dimension_numbers<[1], [0], [0], [1], [0, 0, 1, 1], [], []>} : vector<16x256xbf16>, vector<256x64xbf16>, vector<16x64xf32> -> vector<16x64xf32>
    %20 = arith.addf %17, %19 : vector<16x64xf32>
    %c0_10 = arith.constant 0 : index
    %c0_11 = arith.constant 0 : index
    %21 = vector.load %arg6[%c0_10, %c0_11] : memref<16x64xf32, #tpu.memory_space<vmem>>, vector<16x64xf32>
    tpu.vector_store %arg6[%c0_10, %c0_11], %20 {strides = array<i32>} : memref<16x64xf32, #tpu.memory_space<vmem>>, vector<16x64xf32>,
    %c0_i32_12 = arith.constant 0 : i32
    %22 = arith.cmpi eq, %arg1, %c0_i32_12 : i32
    %23 = arith.extui %22 : i1 to i32
    %c0_i32_13 = arith.constant 0 : i32
    %24 = arith.cmpi ne, %23, %c0_i32_13 : i32
    scf.if %24 {
      %c0_14 = arith.constant 0 : index
      %c0_15 = arith.constant 0 : index
      %25 = vector.load %arg6[%c0_14, %c0_15] : memref<16x64xf32, #tpu.memory_space<vmem>>, vector<16x64xf32>
      %c0_16 = arith.constant 0 : index
      %c0_17 = arith.constant 0 : index
      %26 = vector.load %arg5[%c0_16, %c0_17] : memref<16x64xf32, #tpu.memory_space<vmem>>, vector<16x64xf32>
      tpu.vector_store %arg5[%c0_16, %c0_17], %25 {strides = array<i32>} : memref<16x64xf32, #tpu.memory_space<vmem>>, vector<16x64xf32>,
    } else {
    }
    return
  }
  func.func @transform_0(%arg0: i32, %arg1: i32) -> (i32, i32) {
    %c0_i32 = arith.constant 0 : i32
    %c0_i32_0 = arith.constant 0 : i32
    return %arg0, %c0_i32 : i32, i32
  }
  func.func @transform_1(%arg0: i32, %arg1: i32) -> (i32, i32) {
    %c0_i32 = arith.constant 0 : i32
    %c0_i32_0 = arith.constant 0 : i32
    return %c0_i32, %arg1 : i32, i32
  }
  func.func @transform_2(%arg0: i32, %arg1: i32) -> (i32, i32) {
    %c0_i32 = arith.constant 0 : i32
    %c0_i32_0 = arith.constant 0 : i32
    return %arg1, %c0_i32 : i32, i32
  }
  func.func @transform_3(%arg0: i32, %arg1: i32) -> (i32, i32) {
    %c0_i32 = arith.constant 0 : i32
    %c0_i32_0 = arith.constant 0 : i32
    return %arg0, %c0_i32 : i32, i32
  }
}

</mosaic_0001>

<llo_original>
// kernel: quantized_mlp_forward.1
$region0: #{quantized_mlp_forward.1}
  #allocation0 [shape = 'u32[]', space=smem, size = 0x4, offset = 0x4, fixed_abs, tag = 'smem constant byte address 0x4 - core index']
  #allocation1 [shape = 'u32[144,128]{1,0:T(1,128)}', space=vmem, size = 0x12000, scoped, tag = 'internal scratch']
  #allocation2 [shape = 'f32[16,64]{1,0:T(8,128)}', space=vmem, size = 0x2000, scoped, tag = 'scratch operand']
  %s0 = inlined_call_operand.vmem [shape: bf16[16,64], index: 0, kind: input, shape index: {}]
  %s1 = inlined_call_operand.vmem [shape: bf16[64,512], index: 1, kind: input, shape index: {}]
  %s2 = inlined_call_operand.vmem [shape: bf16[256,64], index: 2, kind: input, shape index: {}]
  %s3 = inlined_call_operand.hbm [shape: f32[16,64], index: 3, kind: output, shape index: {}]
  %s4 = sld [smem:[#allocation0]]
  $region30: #{quantized_mlp_forward.1} parent=0
    _
  %s6 = ssub.s32 1, %s4
  %s7 = scalar_select 0, %s6, %s4
  $region1: #{quantized_mlp_forward.1} parent=0
    #allocation3 [shape = 'u8[8192]{0}', space=vmem, size = 0x2000, scoped, tag = 'output window, operand 0, single buffered']
    #allocation4 [shape = 's32[1]{0}', space=sflag, size = 0x4, scoped, tag = 'scoped memory for quantized_mlp_forward.1']
    %8 = vsyncpa [#allocation4], 0
    // Predicated region
    $region2: #{quantized_mlp_forward.1} parent=1 // pred_check
      _
    $region3: #{quantized_mlp_forward.1} parent=1 // pred_check_branch
      %10 = sbr.rel (0) target = $region5
    $region4: #{quantized_mlp_forward.1} parent=1 // pred_region
      _
    $region5: #{quantized_mlp_forward.1} parent=1 // pred_fallthru
      _
    // Predicated region
    $region6: #{quantized_mlp_forward.1} parent=1 // pred_check
      _
    $region7: #{quantized_mlp_forward.1} parent=1 // pred_check_branch
      %12 = sbr.rel (0) target = $region9
    $region8: #{quantized_mlp_forward.1} parent=1 // pred_region
      _
    $region9: #{quantized_mlp_forward.1} parent=1 // pred_fallthru
      _
    // Predicated region
    $region10: #{quantized_mlp_forward.1} parent=1 // pred_check
      _
    $region11: #{quantized_mlp_forward.1} parent=1 // pred_check_branch
      %14 = sbr.rel (0) target = $region13
    $region12: #{quantized_mlp_forward.1} parent=1 // pred_region
      _
    $region13: #{quantized_mlp_forward.1} parent=1 // pred_fallthru
      _
    %p17 = scmp.eq.s32.totalorder 0, 0
    // Predicated region
    $region14: #{quantized_mlp_forward.1} parent=1 // pred_check
      %p18 = pneg %p17
    $region15: #{quantized_mlp_forward.1} parent=1 // pred_check_branch
      %20 = sbr.rel (%p18) target = $region17
    $region16: #{quantized_mlp_forward.1} parent=1 // pred_region
      %vm21 = vcmask 523264
      %22 = vst.msk [vmem:[#allocation2] sm:$0xff] %vm21, 0.0
      %23 = vst.msk [vmem:[#allocation2 + $0x8] sm:$0xff] %vm21, 0.0
    $region17: #{quantized_mlp_forward.1} parent=1 // pred_fallthru
      _
    %v24 = vld [vmem:[%s0] sm:$0xf]
    %v25 = vld [vmem:[%s0 + $0x4] sm:$0xf]
    %v26 = vld [vmem:[%s1] sm:$0xff]
    %v27 = vld [vmem:[%s1 + $0x8] sm:$0xff]
    %v28 = vld [vmem:[%s1 + $0x10] sm:$0xff]
    %v29 = vld [vmem:[%s1 + $0x18] sm:$0xff]
    %v30 = vld [vmem:[%s1 + $0x20] sm:$0xff]
    %v31 = vld [vmem:[%s1 + $0x28] sm:$0xff]
    %v32 = vld [vmem:[%s1 + $0x30] sm:$0xff]
    %v33 = vld [vmem:[%s1 + $0x38] sm:$0xff]
    %v34 = vld [vmem:[%s1 + $0x40] sm:$0xff]
    %v35 = vld [vmem:[%s1 + $0x48] sm:$0xff]
    %v36 = vld [vmem:[%s1 + $0x50] sm:$0xff]
    %v37 = vld [vmem:[%s1 + $0x58] sm:$0xff]
    %v38 = vld [vmem:[%s1 + $0x60] sm:$0xff]
    %v39 = vld [vmem:[%s1 + $0x68] sm:$0xff]
    %v40 = vld [vmem:[%s1 + $0x70] sm:$0xff]
    %v41 = vld [vmem:[%s1 + $0x78] sm:$0xff]
    %v44 = vunpack.c.l.b16 %v24
    %v45 = vunpack.c.l.b16 %v25
    %v46 = vpack.c.b16 %v45, %v44
    %v63 = vunpack.c.l.b16 %v26
    %v64 = vunpack.c.h.b16 %v26
    %v65 = vunpack.c.l.b16 %v27
    %v66 = vunpack.c.h.b16 %v27
    %v67 = vunpack.c.l.b16 %v28
    %v68 = vunpack.c.h.b16 %v28
    %v69 = vunpack.c.l.b16 %v29
    %v70 = vunpack.c.h.b16 %v29
    %v71 = vunpack.c.l.b16 %v30
    %v72 = vunpack.c.h.b16 %v30
    %v73 = vunpack.c.l.b16 %v31
    %v74 = vunpack.c.h.b16 %v31
    %v75 = vunpack.c.l.b16 %v32
    %v76 = vunpack.c.h.b16 %v32
    %v77 = vunpack.c.l.b16 %v33
    %v78 = vunpack.c.h.b16 %v33
    %v79 = vunpack.c.l.b16 %v34
    %v80 = vunpack.c.h.b16 %v34
    %v81 = vunpack.c.l.b16 %v35
    %v82 = vunpack.c.h.b16 %v35
    %v83 = vunpack.c.l.b16 %v36
    %v84 = vunpack.c.h.b16 %v36
    %v85 = vunpack.c.l.b16 %v37
    %v86 = vunpack.c.h.b16 %v37
    %v87 = vunpack.c.l.b16 %v38
    %v88 = vunpack.c.h.b16 %v38
    %v89 = vunpack.c.l.b16 %v39
    %v90 = vunpack.c.h.b16 %v39
    %v91 = vunpack.c.l.b16 %v40
    %v92 = vunpack.c.h.b16 %v40
    %v93 = vunpack.c.l.b16 %v41
    %v94 = vunpack.c.h.b16 %v41
    %v95 = vpack.c.b16 %v67, %v63
    %v96 = vpack.c.b16 %v68, %v64
    %v97 = vpack.c.b16 %v69, %v65
    %v98 = vpack.c.b16 %v70, %v66
    %v99 = vpack.c.b16 %v75, %v71
    %v100 = vpack.c.b16 %v76, %v72
    %v101 = vpack.c.b16 %v77, %v73
    %v102 = vpack.c.b16 %v78, %v74
    %v103 = vpack.c.b16 %v83, %v79
    %v104 = vpack.c.b16 %v84, %v80
    %v105 = vpack.c.b16 %v85, %v81
    %v106 = vpack.c.b16 %v86, %v82
    %v107 = vpack.c.b16 %v91, %v87
    %v108 = vpack.c.b16 %v92, %v88
    %v109 = vpack.c.b16 %v93, %v89
    %v110 = vpack.c.b16 %v94, %v90
    %vm127 = vcmask 523264
    %v129 = vsel %vm127, %v46, 0
    %131 = vmatprep.subr.bf16.mxu0 %v96
    %132 = vmatpush1.bf16.msra.mxu0 %v95
    %133 = vmatprep.subr.bf16.mxu0 %v100
    %134 = vmatpush1.bf16.msra.mxu0 %v99
    %135 = vmatprep.subr.bf16.mxu0 %v104
    %136 = vmatpush1.bf16.msra.mxu0 %v103
    %137 = vmatprep.subr.bf16.mxu0 %v108
    %138 = vmatpush1.bf16.msra.mxu0 %v107
    %139 = vmatprep.subr.bf16.mxu0 0
    %140 = vmatpush1.bf16.msra.mxu0 0
    %141 = vmatprep.subr.bf16.mxu0 0
    %142 = vmatpush1.bf16.msra.mxu0 0
    %143 = vmatprep.subr.bf16.mxu0 0
    %144 = vmatpush1.bf16.msra.mxu0 0
    %145 = vmatprep.subr.bf16.mxu0 0
    %146 = vmatpush1.bf16.msra.mxu0 0
    %147 = vmatprep.subr.bf16.mxu0 0
    %148 = vmatpush1.bf16.msra.mxu0 0
    %149 = vmatprep.subr.bf16.mxu0 0
    %150 = vmatpush1.bf16.msra.mxu0 0
    %151 = vmatprep.subr.bf16.mxu0 0
    %152 = vmatpush1.bf16.msra.mxu0 0
    %153 = vmatprep.subr.bf16.mxu0 0
    %154 = vmatpush1.bf16.msra.mxu0 0
    %155 = vmatprep.subr.bf16.mxu0 0
    %156 = vmatpush1.bf16.msra.mxu0 0
    %157 = vmatprep.subr.bf16.mxu0 0
    %158 = vmatpush1.bf16.msra.mxu0 0
    %159 = vmatprep.subr.bf16.mxu0 0
    %160 = vmatpush1.bf16.msra.mxu0 0
    %161 = vmatprep.subr.bf16.mxu0 0
    %162 = vmatpush1.bf16.msra.mxu0 0
    %163 = vmatprep.mubr.bf16.mxu0 0
    %164 = vmatmul.mubr.bf16.gmra.mrb[0].mxu0 %v129
    %v165 = vpop.f32.mrb[0].mxu0
    %v166 = vadd.f32 0.0, %v165
    %v167 = vpop.f32.mrb[0].mxu0
    %v168 = vadd.f32 0.0, %v167
    %v169 = vpop.f32.mrb[0].mxu0
    %v170 = vadd.f32 0.0, %v169
    %v171 = vpop.f32.mrb[0].mxu0
    %v172 = vadd.f32 0.0, %v171
    %173 = vdwg.mxu0
    %174 = vmatprep.subr.bf16.mxu0 %v98
    %175 = vmatpush1.bf16.msra.mxu0 %v97
    %176 = vmatprep.subr.bf16.mxu0 %v102
    %177 = vmatpush1.bf16.msra.mxu0 %v101
    %178 = vmatprep.subr.bf16.mxu0 %v106
    %179 = vmatpush1.bf16.msra.mxu0 %v105
    %180 = vmatprep.subr.bf16.mxu0 %v110
    %181 = vmatpush1.bf16.msra.mxu0 %v109
    %182 = vmatprep.subr.bf16.mxu0 0
    %183 = vmatpush1.bf16.msra.mxu0 0
    %184 = vmatprep.subr.bf16.mxu0 0
    %185 = vmatpush1.bf16.msra.mxu0 0
    %186 = vmatprep.subr.bf16.mxu0 0
    %187 = vmatpush1.bf16.msra.mxu0 0
    %188 = vmatprep.subr.bf16.mxu0 0
    %189 = vmatpush1.bf16.msra.mxu0 0
    %190 = vmatprep.subr.bf16.mxu0 0
    %191 = vmatpush1.bf16.msra.mxu0 0
    %192 = vmatprep.subr.bf16.mxu0 0
    %193 = vmatpush1.bf16.msra.mxu0 0
    %194 = vmatprep.subr.bf16.mxu0 0
    %195 = vmatpush1.bf16.msra.mxu0 0
    %196 = vmatprep.subr.bf16.mxu0 0
    %197 = vmatpush1.bf16.msra.mxu0 0
    %198 = vmatprep.subr.bf16.mxu0 0
    %199 = vmatpush1.bf16.msra.mxu0 0
    %200 = vmatprep.subr.bf16.mxu0 0
    %201 = vmatpush1.bf16.msra.mxu0 0
    %202 = vmatprep.subr.bf16.mxu0 0
    %203 = vmatpush1.bf16.msra.mxu0 0
    %204 = vmatprep.subr.bf16.mxu0 0
    %205 = vmatpush1.bf16.msra.mxu0 0
    %206 = vmatprep.mubr.bf16.mxu0 0
    %207 = vmatmul.mubr.bf16.gmra.mrb[0].mxu0 %v129
    %v208 = vpop.f32.mrb[0].mxu0
    %v209 = vadd.f32 0.0, %v208
    %v210 = vpop.f32.mrb[0].mxu0
    %v211 = vadd.f32 0.0, %v210
    %v212 = vpop.f32.mrb[0].mxu0
    %v213 = vadd.f32 0.0, %v212
    %v214 = vpop.f32.mrb[0].mxu0
    %v215 = vadd.f32 0.0, %v214
    %216 = vdwg.mxu0
    %v217 = vpack.c.bf16 %v170, %v166
    %v218 = vpack.c.bf16 %v172, %v168
    %v219 = vpack.c.bf16 %v213, %v209
    %v220 = vpack.c.bf16 %v215, %v211
    %v221 = vxor.u32 %v217, 2147516416
    %v222 = vxor.u32 %v218, 2147516416
    %v224 = vmul.bf16 %v221, 1069105081
    %v225 = vpow.bf16.pop %v224
    %v227 = vmul.bf16 %v222, 1069105081
    %v228 = vpow.bf16.pop %v227
    %v229 = vadd.bf16 %v225, 1065369472
    %v230 = vadd.bf16 %v228, 1065369472
    %v231 = vrcp.bf16.pop %v229
    %v232 = vmul.bf16 1065369472, %v231
    %v233 = vrcp.bf16.pop %v230
    %v234 = vmul.bf16 1065369472, %v233
    %v235 = vmul.bf16 %v217, %v232
    %v236 = vmul.bf16 %v218, %v234
    %v237 = vmul.bf16 %v235, %v219
    %v238 = vmul.bf16 %v236, %v220
    %v239 = vld [vmem:[#allocation2] sm:$0xff]
    %v240 = vld [vmem:[#allocation2 + $0x8] sm:$0xff]
    %v241 = vld [vmem:[%s2] sm:$0xf]
    %v242 = vld [vmem:[%s2 + $0x4] sm:$0xf]
    %v243 = vld [vmem:[%s2 + $0x8] sm:$0xf]
    %v244 = vld [vmem:[%s2 + $0xc] sm:$0xf]
    %v245 = vld [vmem:[%s2 + $0x10] sm:$0xf]
    %v246 = vld [vmem:[%s2 + $0x14] sm:$0xf]
    %v247 = vld [vmem:[%s2 + $0x18] sm:$0xf]
    %v248 = vld [vmem:[%s2 + $0x1c] sm:$0xf]
    %v249 = vld [vmem:[%s2 + $0x20] sm:$0xf]
    %v250 = vld [vmem:[%s2 + $0x24] sm:$0xf]
    %v251 = vld [vmem:[%s2 + $0x28] sm:$0xf]
    %v252 = vld [vmem:[%s2 + $0x2c] sm:$0xf]
    %v253 = vld [vmem:[%s2 + $0x30] sm:$0xf]
    %v254 = vld [vmem:[%s2 + $0x34] sm:$0xf]
    %v255 = vld [vmem:[%s2 + $0x38] sm:$0xf]
    %v256 = vld [vmem:[%s2 + $0x3c] sm:$0xf]
    %v257 = vld [vmem:[%s2 + $0x40] sm:$0xf]
    %v258 = vld [vmem:[%s2 + $0x44] sm:$0xf]
    %v259 = vld [vmem:[%s2 + $0x48] sm:$0xf]
    %v260 = vld [vmem:[%s2 + $0x4c] sm:$0xf]
    %v261 = vld [vmem:[%s2 + $0x50] sm:$0xf]
    %v262 = vld [vmem:[%s2 + $0x54] sm:$0xf]
    %v263 = vld [vmem:[%s2 + $0x58] sm:$0xf]
    %v264 = vld [vmem:[%s2 + $0x5c] sm:$0xf]
    %v265 = vld [vmem:[%s2 + $0x60] sm:$0xf]
    %v266 = vld [vmem:[%s2 + $0x64] sm:$0xf]
    %v267 = vld [vmem:[%s2 + $0x68] sm:$0xf]
    %v268 = vld [vmem:[%s2 + $0x6c] sm:$0xf]
    %v269 = vld [vmem:[%s2 + $0x70] sm:$0xf]
    %v270 = vld [vmem:[%s2 + $0x74] sm:$0xf]
    %v271 = vld [vmem:[%s2 + $0x78] sm:$0xf]
    %v272 = vld [vmem:[%s2 + $0x7c] sm:$0xf]
    %v305 = vunpack.c.l.b16 %v241
    %v306 = vunpack.c.l.b16 %v242
    %v307 = vunpack.c.l.b16 %v243
    %v308 = vunpack.c.l.b16 %v244
    %v309 = vunpack.c.l.b16 %v245
    %v310 = vunpack.c.l.b16 %v246
    %v311 = vunpack.c.l.b16 %v247
    %v312 = vunpack.c.l.b16 %v248
    %v313 = vunpack.c.l.b16 %v249
    %v314 = vunpack.c.l.b16 %v250
    %v315 = vunpack.c.l.b16 %v251
    %v316 = vunpack.c.l.b16 %v252
    %v317 = vunpack.c.l.b16 %v253
    %v318 = vunpack.c.l.b16 %v254
    %v319 = vunpack.c.l.b16 %v255
    %v320 = vunpack.c.l.b16 %v256
    %v321 = vunpack.c.l.b16 %v257
    %v322 = vunpack.c.l.b16 %v258
    %v323 = vunpack.c.l.b16 %v259
    %v324 = vunpack.c.l.b16 %v260
    %v325 = vunpack.c.l.b16 %v261
    %v326 = vunpack.c.l.b16 %v262
    %v327 = vunpack.c.l.b16 %v263
    %v328 = vunpack.c.l.b16 %v264
    %v329 = vunpack.c.l.b16 %v265
    %v330 = vunpack.c.l.b16 %v266
    %v331 = vunpack.c.l.b16 %v267
    %v332 = vunpack.c.l.b16 %v268
    %v333 = vunpack.c.l.b16 %v269
    %v334 = vunpack.c.l.b16 %v270
    %v335 = vunpack.c.l.b16 %v271
    %v336 = vunpack.c.l.b16 %v272
    %v337 = vpack.c.b16 %v306, %v305
    %v338 = vpack.c.b16 %v308, %v307
    %v339 = vpack.c.b16 %v310, %v309
    %v340 = vpack.c.b16 %v312, %v311
    %v341 = vpack.c.b16 %v314, %v313
    %v342 = vpack.c.b16 %v316, %v315
    %v343 = vpack.c.b16 %v318, %v317
    %v344 = vpack.c.b16 %v320, %v319
    %v345 = vpack.c.b16 %v322, %v321
    %v346 = vpack.c.b16 %v324, %v323
    %v347 = vpack.c.b16 %v326, %v325
    %v348 = vpack.c.b16 %v328, %v327
    %v349 = vpack.c.b16 %v330, %v329
    %v350 = vpack.c.b16 %v332, %v331
    %v351 = vpack.c.b16 %v334, %v333
    %v352 = vpack.c.b16 %v336, %v335
    %369 = vmatprep.subr.bf16.mxu0 0
    %370 = vmatpush1.bf16.msra.mxu0 %v337
    %371 = vmatprep.subr.bf16.mxu0 0
    %372 = vmatpush1.bf16.msra.mxu0 %v338
    %373 = vmatprep.subr.bf16.mxu0 0
    %374 = vmatpush1.bf16.msra.mxu0 %v339
    %375 = vmatprep.subr.bf16.mxu0 0
    %376 = vmatpush1.bf16.msra.mxu0 %v340
    %377 = vmatprep.subr.bf16.mxu0 0
    %378 = vmatpush1.bf16.msra.mxu0 %v341
    %379 = vmatprep.subr.bf16.mxu0 0
    %380 = vmatpush1.bf16.msra.mxu0 %v342
    %381 = vmatprep.subr.bf16.mxu0 0
    %382 = vmatpush1.bf16.msra.mxu0 %v343
    %383 = vmatprep.subr.bf16.mxu0 0
    %384 = vmatpush1.bf16.msra.mxu0 %v344
    %385 = vmatprep.subr.bf16.mxu0 0
    %386 = vmatpush1.bf16.msra.mxu0 %v345
    %387 = vmatprep.subr.bf16.mxu0 0
    %388 = vmatpush1.bf16.msra.mxu0 %v346
    %389 = vmatprep.subr.bf16.mxu0 0
    %390 = vmatpush1.bf16.msra.mxu0 %v347
    %391 = vmatprep.subr.bf16.mxu0 0
    %392 = vmatpush1.bf16.msra.mxu0 %v348
    %393 = vmatprep.subr.bf16.mxu0 0
    %394 = vmatpush1.bf16.msra.mxu0 %v349
    %395 = vmatprep.subr.bf16.mxu0 0
    %396 = vmatpush1.bf16.msra.mxu0 %v350
    %397 = vmatprep.subr.bf16.mxu0 0
    %398 = vmatpush1.bf16.msra.mxu0 %v351
    %399 = vmatprep.subr.bf16.mxu0 0
    %400 = vmatpush1.bf16.msra.mxu0 %v352
    %401 = vmatprep.mubr.bf16.mxu0 %v238
    %402 = vmatmul.mubr.bf16.gmra.mrb[0].mxu0 %v237
    %v403 = vpop.f32.mrb[0].mxu0
    %v404 = vadd.f32 0.0, %v403
    %v405 = vpop.f32.mrb[0].mxu0
    %v406 = vpop.f32.mrb[0].mxu0
    %v407 = vadd.f32 0.0, %v406
    %v408 = vpop.f32.mrb[0].mxu0
    %409 = vdwg.mxu0
    %v410 = vadd.f32 %v239, %v404
    %v411 = vadd.f32 %v240, %v407
    %412 = vst.msk [vmem:[#allocation2] sm:$0xff] %vm127, %v410
    %413 = vst.msk [vmem:[#allocation2 + $0x8] sm:$0xff] %vm127, %v411
    // Predicated region
    $region18: #{quantized_mlp_forward.1} parent=1 // pred_check
      %p414 = pneg %p17
    $region19: #{quantized_mlp_forward.1} parent=1 // pred_check_branch
      %416 = sbr.rel (%p414) target = $region21
    $region20: #{quantized_mlp_forward.1} parent=1 // pred_region
      %v417 = vld [vmem:[#allocation2] sm:$0xff]
      %v418 = vld [vmem:[#allocation2 + $0x8] sm:$0xff]
      %419 = vst.msk [vmem:[#allocation3] sm:$0xff] %vm127, %v417
      %420 = vst.msk [vmem:[#allocation3 + $0x8] sm:$0xff] %vm127, %v418
    $region21: #{quantized_mlp_forward.1} parent=1 // pred_fallthru
      _
    // Predicated region
    $region22: #{quantized_mlp_forward.1} parent=1 // pred_check
      _
    $region23: #{quantized_mlp_forward.1} parent=1 // pred_check_branch
      %422 = sbr.rel (0) target = $region25
    $region24: #{quantized_mlp_forward.1} parent=1 // pred_region
      %s424 = ssub.s32 256, 256
      %425 = vsyncadd [#allocation4], %s424
      %s426 = sshll.u32 [#allocation3], 4
      %s427 = int_to_ptr.vmem [resolvable:$true] %s426
      %432 = dma.vmem_to_hbm [thread:$0]  %s427, 256, %s3, [#allocation4], 128, 128, 8
    $region25: #{quantized_mlp_forward.1} parent=1 // pred_fallthru
      _
    // Predicated region
    $region26: #{quantized_mlp_forward.1} parent=1 // pred_check
      _
    $region27: #{quantized_mlp_forward.1} parent=1 // pred_check_branch
      %434 = sbr.rel (0) target = $region29
    $region28: #{quantized_mlp_forward.1} parent=1 // pred_region
      %435 = dma.done [#allocation4], 256
    $region29: #{quantized_mlp_forward.1} parent=1 // pred_fallthru
      _
    %436 = vsyncpa [#allocation4], 1

</llo_original>
